<compile_context>
chip_gen: v7x
topology: tpu7x:2x2x1
jax: 0.10.0
libtpu: 0.0.40
codegen_flags: <defaults>
</compile_context>

<pallas_src>
import functools

import jax
import jax.numpy as jnp
from jax.experimental import pallas as pl
from jax.experimental.pallas import tpu as pltpu

LANE = 128


def _round_up(x, m):
    return (x + m - 1) // m * m


def _pad_to(x, rows, cols):
    r, c = x.shape
    return jnp.pad(x, ((0, rows - r), (0, cols - c)))


def _choose_tiles(n):
    """Padded node count, destination tile, source chunk."""
    np_ = _round_up(n, 8)
    if np_ >= 256:
        np_ = _round_up(n, 128)
        ti, nk = 128, 128
    elif np_ >= 16:
        np_ = _round_up(n, 16)
        ti, nk = np_ // 2, np_          # >=2 dest tiles (keeps both v7x TCs busy)
    else:
        ti, nk = np_, np_
    return np_, ti, nk


def _choose_sub(nk):
    """Largest source sub-chunk <=32 dividing nk (bounds live 3-D temporaries)."""
    if nk <= 32:
        return nk
    for cand in (32, 24, 16, 8):
        if nk % cand == 0:
            return cand
    return 8


# ------------------------------ Pallas kernel ----------------------------------
def spacial_conv_kernel(u_src_ref, v_dst_ref, adjn_ref, h_ref,
                        w2_ref, b2_ref, wout_ref, bout_ref, out_ref, acc_ref,
                        *, apply_act, sub):
    k = pl.program_id(1)

    @pl.when(k == 0)
    def _():
        acc_ref[...] = jnp.zeros_like(acc_ref)

    ti, hp = v_dst_ref.shape            # dest tile, padded hidden width
    nk = u_src_ref.shape[0]             # source chunk
    fp = h_ref.shape[1]                 # padded feature width

    v_dst = v_dst_ref[...]              # (ti, hp) f32
    adjn = adjn_ref[...]                # (ti, nk) f32, adjacency * 1/deg
    h_blk = h_ref[...]                  # (nk, fp) f32
    u_blk = u_src_ref[...]              # (nk, hp) f32

    # b2 hoisted out of the edge MLP:
    #   sum_j adjn_ij * b2 * h_j == b2 * (adjn @ h)_i   (one small MXU matmul)
    part = jnp.dot(adjn.astype(jnp.bfloat16), h_blk.astype(jnp.bfloat16),
                   preferred_element_type=jnp.float32) * b2_ref[...]   # (ti, fp)

    # Edge-filter MLP over source sub-chunks (keeps 3-D temps small).
    for s in range(nk // sub):
        off = s * sub
        u_sub = u_blk[off:off + sub, :]                         # (sub, hp)
        h_sub = h_blk[off:off + sub, :]                         # (sub, fp)
        a_sub = adjn[:, off:off + sub]                          # (ti, sub)

        # rel @ W1 + b1 == U_src - V_dst (W1 hoisted to host); subtract in f32.
        diff = u_sub[None, :, :] - v_dst[:, None, :]            # (ti, sub, hp)
        # adjacency/deg applied BEFORE W2 (exact: @W2 is linear), fused with ReLU;
        # cast to bf16 only at the MXU boundary.
        hid = (jnp.maximum(diff, 0.0) * a_sub[:, :, None]).astype(jnp.bfloat16)
        filt = jnp.dot(hid.reshape(ti * sub, hp), w2_ref[...],
                       preferred_element_type=jnp.float32)      # (ti*sub, fp)
        gated = filt.reshape(ti, sub, fp) * h_sub[None, :, :]   # gate by source feats
        part = part + jnp.sum(gated, axis=1)                    # (ti, fp)

    acc_ref[...] += part

    @pl.when(k == pl.num_programs(1) - 1)
    def _():
        out = jnp.dot(acc_ref[...].astype(jnp.bfloat16), wout_ref[...],
                      preferred_element_type=jnp.float32) + bout_ref[...]
        if apply_act:
            out = jnp.where(out > 0.0, out, 0.01 * out)         # leaky_relu
        out_ref[...] = out.astype(out_ref.dtype)


def spacial_conv_pallas(u_src, v_dst, adjn, h, w2, b2, wout, bout,
                        *, apply_act, ti, nk):
    np_ = adjn.shape[0]
    hp = u_src.shape[1]
    fp = h.shape[1]
    fop = wout.shape[1]
    sub = _choose_sub(nk)
    kernel = functools.partial(spacial_conv_kernel, apply_act=apply_act, sub=sub)
    return pl.pallas_call(
        kernel,
        out_shape=jax.ShapeDtypeStruct((np_, fop), jnp.float32),
        grid_spec=pltpu.PrefetchScalarGridSpec(
            num_scalar_prefetch=0,
            grid=(np_ // ti, np_ // nk),
            in_specs=[
                pl.BlockSpec((nk, hp), lambda i, k: (k, 0)),    # U  (src chunk)
                pl.BlockSpec((ti, hp), lambda i, k: (i, 0)),    # V  (dst tile)
                pl.BlockSpec((ti, nk), lambda i, k: (i, k)),    # adj * 1/deg tile
                pl.BlockSpec((nk, fp), lambda i, k: (k, 0)),    # h  (src chunk)
                pl.BlockSpec((hp, fp), lambda i, k: (0, 0)),    # W2   (bf16)
                pl.BlockSpec((1, fp), lambda i, k: (0, 0)),     # b2
                pl.BlockSpec((fp, fop), lambda i, k: (0, 0)),   # Wout (bf16)
                pl.BlockSpec((1, fop), lambda i, k: (0, 0)),    # bout
            ],
            out_specs=pl.BlockSpec((ti, fop), lambda i, k: (i, 0)),
            scratch_shapes=[pltpu.VMEM((ti, fp), jnp.float32)],
        ),
        compiler_params=pltpu.CompilerParams(
            dimension_semantics=("parallel", "arbitrary"),
            vmem_limit_bytes=40 * 1024 * 1024),
    )(u_src, v_dst, adjn, h, w2, b2, wout, bout)


# ------------------------------- GNN forward -----------------------------------
def gnn_forward(coords, adj, x, layer_params):
    """GNN.forward (eval mode): stacked SpacialConv + leaky_relu between layers."""
    n = coords.shape[0]
    np_, ti, nk = _choose_tiles(n)

    deg = jnp.maximum(jnp.sum(adj, axis=1, keepdims=True), 1.0)
    adjn = _pad_to(adj / deg, np_, np_)          # 1/deg folded into adjacency
    coords_p = _pad_to(coords, np_, coords.shape[1])
    h = _pad_to(x, np_, _round_up(x.shape[1], LANE))

    hi = jax.lax.Precision.HIGHEST
    n_layers = len(layer_params)
    for l, p in enumerate(layer_params):
        hp = _round_up(p["w1"].shape[1], LANE)
        fp = h.shape[1]
        fop = _round_up(p["wout"].shape[1], LANE)

        w1p = _pad_to(p["w1"], coords.shape[1], hp)
        b1p = _pad_to(p["b1"], 1, hp)
        w2p = _pad_to(p["w2"], hp, fp).astype(jnp.bfloat16)       # host pre-cast
        b2p = _pad_to(p["b2"], 1, fp)
        woutp = _pad_to(p["wout"], fp, fop).astype(jnp.bfloat16)  # host pre-cast
        boutp = _pad_to(p["bout"], 1, fop)

        # Hoist the (C -> H) filter matmul out of the kernel (grid-invariant):
        #   rel_ij @ W1 + b1 = (coords_j @ W1 + b1) - coords_i @ W1
        cu = jnp.dot(coords_p, w1p, precision=hi)
        u_src = cu + b1p
        v_dst = cu

        h = spacial_conv_pallas(u_src, v_dst, adjn, h, w2p, b2p, woutp, boutp,
                                apply_act=(l != n_layers - 1), ti=ti, nk=nk)
        # dropout(0.5): identity in eval mode

    fout = layer_params[-1]["wout"].shape[1]
    return h[:n, :fout]


# ---------------------- pure-JAX reference (for checking) ----------------------
def spacial_conv_ref(coords, adj, deg_inv, h, p):
    hi = jax.lax.Precision.HIGHEST
    rel = coords[None, :, :] - coords[:, None, :]                  # (N, N, C)
    hid = jnp.maximum(
        jnp.einsum("ijc,ch->ijh", rel, p["w1"], precision=hi) + p["b1"], 0.0)
    filt = jnp.einsum("ijh,hf->ijf", hid, p["w2"], precision=hi) + p["b2"]
    msg = filt * h[None, :, :]
    agg = jnp.einsum("ij,ijf->if", adj, msg, precision=hi) * deg_inv
    return jnp.dot(agg, p["wout"], precision=hi) + p["bout"]


def gnn_ref(coords, adj, x, layer_params):
    deg = jnp.maximum(jnp.sum(adj, axis=1, keepdims=True), 1.0)
    deg_inv = 1.0 / deg
    h = x
    n_layers = len(layer_params)
    for l, p in enumerate(layer_params):
        h = spacial_conv_ref(coords, adj, deg_inv, h, p)
        if l != n_layers - 1:
            h = jnp.where(h > 0.0, h, 0.01 * h)
    return h


# ------------------------------- parameter init --------------------------------
def init_spacial_conv(key, coors, in_feats, out_feats, n_hidden):
    ks = jax.random.split(key, 6)

    def lin(k, fan_in, shape):
        return (jax.random.normal(k, shape, jnp.float32)
                / jnp.sqrt(jnp.float32(fan_in)))

    return dict(
        w1=lin(ks[0], coors, (coors, n_hidden)),
        b1=0.1 * jax.random.normal(ks[1], (1, n_hidden), jnp.float32),
        w2=lin(ks[2], n_hidden, (n_hidden, in_feats)),
        b2=0.1 * jax.random.normal(ks[3], (1, in_feats), jnp.float32),
        wout=lin(ks[4], in_feats, (in_feats, out_feats)),
        bout=0.1 * jax.random.normal(ks[5], (1, out_feats), jnp.float32),
    )


def init_gnn(key, coors, in_feats, out_feats, n_hidden, n_layers):
    keys = jax.random.split(key, n_layers)
    params = [init_spacial_conv(keys[0], coors, in_feats, out_feats, n_hidden)]
    for l in range(1, n_layers):
        params.append(
            init_spacial_conv(keys[l], coors, out_feats, out_feats, n_hidden))
    return params


if __name__ == "__main__":
    COORS, IN_FEATS, OUT_FEATS, N_HIDDEN, N_LAYERS = 3, 8, 16, 32, 2

    def run_case(key, n_nodes, edge_p):
        k_x, k_c, k_a, k_p = jax.random.split(key, 4)
        x = jax.random.normal(k_x, (n_nodes, IN_FEATS), jnp.float32)
        coords = jax.random.normal(k_c, (n_nodes, COORS), jnp.float32)
        adj = (jax.random.uniform(k_a, (n_nodes, n_nodes)) < edge_p
               ).astype(jnp.float32)
        adj = jnp.maximum(adj, jnp.eye(n_nodes, dtype=jnp.float32))  # self loops
        params = init_gnn(k_p, COORS, IN_FEATS, OUT_FEATS, N_HIDDEN, N_LAYERS)

        out = jax.block_until_ready(gnn_forward(coords, adj, x, params))
        ref = jax.block_until_ready(gnn_ref(coords, adj, x, params))
        assert out.shape == (n_nodes, OUT_FEATS)
        err = float(jnp.max(jnp.abs(out - ref)))
        # bf16 MXU operands (f32 accumulation) -> loosened tolerance vs f32 ref
        assert jnp.allclose(out, ref, atol=5e-2, rtol=5e-2), \
            f"mismatch vs JAX reference (n={n_nodes}, max abs err {err:.3e})"

    key = jax.random.PRNGKey(0)
    k1, k2 = jax.random.split(key)
    run_case(k1, 16, 0.3)    # small graph: 2 dest tiles of 8, single src chunk
    run_case(k2, 256, 0.05)  # tiled path: ti=nk=128, sub-chunk=32, 2x2 grid

    print("KERNEL_OK")
</pallas_src>

<mosaic_0001>
module attributes {stable_mosaic.version = 11 : i64} {
  func.func @spacial_conv_kernel(%arg0: i32, %arg1: i32, %arg2: memref<16x128xf32, #tpu.memory_space<vmem>>, %arg3: memref<8x128xf32, #tpu.memory_space<vmem>>, %arg4: memref<8x16xf32, #tpu.memory_space<vmem>>, %arg5: memref<16x128xf32, #tpu.memory_space<vmem>>, %arg6: memref<128x128xbf16, #tpu.memory_space<vmem>>, %arg7: memref<1x128xf32, #tpu.memory_space<vmem>>, %arg8: memref<128x128xbf16, #tpu.memory_space<vmem>>, %arg9: memref<1x128xf32, #tpu.memory_space<vmem>>, %arg10: memref<8x128xf32, #tpu.memory_space<vmem>>, %arg11: memref<8x128xf32, #tpu.memory_space<vmem>>) attributes {dimension_semantics = [#tpu.dimension_semantics<parallel>, #tpu.dimension_semantics<arbitrary>], iteration_bounds = array<i64: 2, 1>, scalar_prefetch = 0 : i64, scratch_operands = 1 : i64, tpu.core_type = #tpu.core_type<tc>, window_params = [{transform_indices = @transform_0, window_bounds = array<i64: 16, 128>}, {transform_indices = @transform_1, window_bounds = array<i64: 8, 128>}, {transform_indices = @transform_2, window_bounds = array<i64: 8, 16>}, {transform_indices = @transform_3, window_bounds = array<i64: 16, 128>}, {pipeline_mode = #tpu.pipeline_mode<synchronous>, transform_indices = @transform_4, window_bounds = array<i64: 128, 128>}, {pipeline_mode = #tpu.pipeline_mode<synchronous>, transform_indices = @transform_5, window_bounds = array<i64: 1, 128>}, {pipeline_mode = #tpu.pipeline_mode<synchronous>, transform_indices = @transform_6, window_bounds = array<i64: 128, 128>}, {pipeline_mode = #tpu.pipeline_mode<synchronous>, transform_indices = @transform_7, window_bounds = array<i64: 1, 128>}, {transform_indices = @transform_8, window_bounds = array<i64: 8, 128>}]} {
    %c0_i32 = arith.constant 0 : i32
    %0 = arith.cmpi eq, %arg1, %c0_i32 : i32
    %1 = arith.extui %0 : i1 to i32
    %c0_i32_0 = arith.constant 0 : i32
    %2 = arith.cmpi ne, %1, %c0_i32_0 : i32
    scf.if %2 {
      %cst_21 = arith.constant 0.000000e+00 : f32
      %39 = vector.broadcast %cst_21 : f32 to vector<8x128xf32>
      %c0_22 = arith.constant 0 : index
      %c0_23 = arith.constant 0 : index
      %40 = vector.load %arg11[%c0_22, %c0_23] : memref<8x128xf32, #tpu.memory_space<vmem>>, vector<8x128xf32>
      tpu.vector_store %arg11[%c0_22, %c0_23], %39 {strides = array<i32>} : memref<8x128xf32, #tpu.memory_space<vmem>>, vector<8x128xf32>,
    } else {
    }
    %c0 = arith.constant 0 : index
    %c0_1 = arith.constant 0 : index
    %3 = vector.load %arg3[%c0, %c0_1] : memref<8x128xf32, #tpu.memory_space<vmem>>, vector<8x128xf32>
    %c0_2 = arith.constant 0 : index
    %c0_3 = arith.constant 0 : index
    %4 = vector.load %arg4[%c0_2, %c0_3] : memref<8x16xf32, #tpu.memory_space<vmem>>, vector<8x16xf32>
    %c0_4 = arith.constant 0 : index
    %c0_5 = arith.constant 0 : index
    %5 = vector.load %arg5[%c0_4, %c0_5] : memref<16x128xf32, #tpu.memory_space<vmem>>, vector<16x128xf32>
    %c0_6 = arith.constant 0 : index
    %c0_7 = arith.constant 0 : index
    %6 = vector.load %arg2[%c0_6, %c0_7] : memref<16x128xf32, #tpu.memory_space<vmem>>, vector<16x128xf32>
    %7 = arith.truncf %4 : vector<8x16xf32> to vector<8x16xbf16>
    %8 = arith.truncf %5 : vector<16x128xf32> to vector<16x128xbf16>
    %cst = arith.constant dense<0.000000e+00> : vector<8x128xf32>
    %9 = tpu.matmul %7, %8, %cst {dimension_numbers = #tpu.dot_dimension_numbers<[1], [0], [0], [1], [0, 0, 1, 1], [], []>} : vector<8x16xbf16>, vector<16x128xbf16>, vector<8x128xf32> -> vector<8x128xf32>
    %c0_8 = arith.constant 0 : index
    %c0_9 = arith.constant 0 : index
    %10 = vector.load %arg7[%c0_8, %c0_9] : memref<1x128xf32, #tpu.memory_space<vmem>>, vector<1x128xf32>
    %11 = vector.broadcast %10 : vector<1x128xf32> to vector<8x128xf32>
    %12 = arith.mulf %9, %11 : vector<8x128xf32>
    %13 = vector.shape_cast %6 : vector<16x128xf32> to vector<1x16x128xf32>
    %14 = vector.shape_cast %3 : vector<8x128xf32> to vector<8x1x128xf32>
    %15 = vector.broadcast %13 : vector<1x16x128xf32> to vector<8x16x128xf32>
    %16 = vector.broadcast %14 : vector<8x1x128xf32> to vector<8x16x128xf32>
    %17 = arith.subf %15, %16 : vector<8x16x128xf32>
    %cst_10 = arith.constant 0.000000e+00 : f32
    %18 = vector.broadcast %cst_10 : f32 to vector<8x16x128xf32>
    %19 = arith.maximumf %17, %18 : vector<8x16x128xf32>
    %20 = vector.shape_cast %4 : vector<8x16xf32> to vector<8x16x1xf32>
    %21 = vector.broadcast %20 : vector<8x16x1xf32> to vector<8x16x128xf32>
    %22 = arith.mulf %19, %21 : vector<8x16x128xf32>
    %23 = arith.truncf %22 : vector<8x16x128xf32> to vector<8x16x128xbf16>
    %24 = vector.shape_cast %23 : vector<8x16x128xbf16> to vector<128x128xbf16>
    %c0_11 = arith.constant 0 : index
    %c0_12 = arith.constant 0 : index
    %25 = vector.load %arg6[%c0_11, %c0_12] : memref<128x128xbf16, #tpu.memory_space<vmem>>, vector<128x128xbf16>
    %cst_13 = arith.constant dense<0.000000e+00> : vector<128x128xf32>
    %26 = tpu.matmul %24, %25, %cst_13 {dimension_numbers = #tpu.dot_dimension_numbers<[1], [0], [0], [1], [0, 0, 1, 1], [], []>} : vector<128x128xbf16>, vector<128x128xbf16>, vector<128x128xf32> -> vector<128x128xf32>
    %27 = vector.shape_cast %26 : vector<128x128xf32> to vector<8x16x128xf32>
    %28 = vector.shape_cast %5 : vector<16x128xf32> to vector<1x16x128xf32>
    %29 = vector.broadcast %28 : vector<1x16x128xf32> to vector<8x16x128xf32>
    %30 = arith.mulf %27, %29 : vector<8x16x128xf32>
    %cst_14 = arith.constant dense<0.000000e+00> : vector<8x128xf32>
    %31 = vector.multi_reduction <add>, %30, %cst_14 [1] : vector<8x16x128xf32> to vector<8x128xf32>
    %32 = arith.addf %12, %31 : vector<8x128xf32>
    %c0_15 = arith.constant 0 : index
    %c0_16 = arith.constant 0 : index
    %33 = vector.load %arg11[%c0_15, %c0_16] : memref<8x128xf32, #tpu.memory_space<vmem>>, vector<8x128xf32>
    %34 = arith.addf %33, %32 : vector<8x128xf32>
    %c0_17 = arith.constant 0 : index
    %c0_18 = arith.constant 0 : index
    %35 = vector.load %arg11[%c0_17, %c0_18] : memref<8x128xf32, #tpu.memory_space<vmem>>, vector<8x128xf32>
    tpu.vector_store %arg11[%c0_17, %c0_18], %34 {strides = array<i32>} : memref<8x128xf32, #tpu.memory_space<vmem>>, vector<8x128xf32>,
    %c0_i32_19 = arith.constant 0 : i32
    %36 = arith.cmpi eq, %arg1, %c0_i32_19 : i32
    %37 = arith.extui %36 : i1 to i32
    %c0_i32_20 = arith.constant 0 : i32
    %38 = arith.cmpi ne, %37, %c0_i32_20 : i32
    scf.if %38 {
      %c0_21 = arith.constant 0 : index
      %c0_22 = arith.constant 0 : index
      %39 = vector.load %arg11[%c0_21, %c0_22] : memref<8x128xf32, #tpu.memory_space<vmem>>, vector<8x128xf32>
      %40 = arith.truncf %39 : vector<8x128xf32> to vector<8x128xbf16>
      %c0_23 = arith.constant 0 : index
      %c0_24 = arith.constant 0 : index
      %41 = vector.load %arg8[%c0_23, %c0_24] : memref<128x128xbf16, #tpu.memory_space<vmem>>, vector<128x128xbf16>
      %cst_25 = arith.constant dense<0.000000e+00> : vector<8x128xf32>
      %42 = tpu.matmul %40, %41, %cst_25 {dimension_numbers = #tpu.dot_dimension_numbers<[1], [0], [0], [1], [0, 0, 1, 1], [], []>} : vector<8x128xbf16>, vector<128x128xbf16>, vector<8x128xf32> -> vector<8x128xf32>
      %c0_26 = arith.constant 0 : index
      %c0_27 = arith.constant 0 : index
      %43 = vector.load %arg9[%c0_26, %c0_27] : memref<1x128xf32, #tpu.memory_space<vmem>>, vector<1x128xf32>
      %44 = vector.broadcast %43 : vector<1x128xf32> to vector<8x128xf32>
      %45 = arith.addf %42, %44 : vector<8x128xf32>
      %cst_28 = arith.constant 0.000000e+00 : f32
      %46 = vector.broadcast %cst_28 : f32 to vector<8x128xf32>
      %47 = arith.cmpf ogt, %45, %46 : vector<8x128xf32>
      %cst_29 = arith.constant 0.00999999977 : f32
      %48 = vector.broadcast %cst_29 : f32 to vector<8x128xf32>
      %49 = arith.mulf %48, %45 : vector<8x128xf32>
      %50 = arith.select %47, %45, %49 : vector<8x128xi1>, vector<8x128xf32>
      %c0_30 = arith.constant 0 : index
      %c0_31 = arith.constant 0 : index
      %51 = vector.load %arg10[%c0_30, %c0_31] : memref<8x128xf32, #tpu.memory_space<vmem>>, vector<8x128xf32>
      tpu.vector_store %arg10[%c0_30, %c0_31], %50 {strides = array<i32>} : memref<8x128xf32, #tpu.memory_space<vmem>>, vector<8x128xf32>,
    } else {
    }
    return
  }
  func.func @transform_0(%arg0: i32, %arg1: i32) -> (i32, i32) {
    %c0_i32 = arith.constant 0 : i32
    %c0_i32_0 = arith.constant 0 : i32
    return %arg1, %c0_i32 : i32, i32
  }
  func.func @transform_1(%arg0: i32, %arg1: i32) -> (i32, i32) {
    %c0_i32 = arith.constant 0 : i32
    %c0_i32_0 = arith.constant 0 : i32
    return %arg0, %c0_i32 : i32, i32
  }
  func.func @transform_2(%arg0: i32, %arg1: i32) -> (i32, i32) {
    %c0_i32 = arith.constant 0 : i32
    return %arg0, %arg1 : i32, i32
  }
  func.func @transform_3(%arg0: i32, %arg1: i32) -> (i32, i32) {
    %c0_i32 = arith.constant 0 : i32
    %c0_i32_0 = arith.constant 0 : i32
    return %arg1, %c0_i32 : i32, i32
  }
  func.func @transform_4(%arg0: i32, %arg1: i32) -> (i32, i32) {
    %c0_i32 = arith.constant 0 : i32
    %c0_i32_0 = arith.constant 0 : i32
    %c0_i32_1 = arith.constant 0 : i32
    return %c0_i32, %c0_i32_0 : i32, i32
  }
  func.func @transform_5(%arg0: i32, %arg1: i32) -> (i32, i32) {
    %c0_i32 = arith.constant 0 : i32
    %c0_i32_0 = arith.constant 0 : i32
    %c0_i32_1 = arith.constant 0 : i32
    return %c0_i32, %c0_i32_0 : i32, i32
  }
  func.func @transform_6(%arg0: i32, %arg1: i32) -> (i32, i32) {
    %c0_i32 = arith.constant 0 : i32
    %c0_i32_0 = arith.constant 0 : i32
    %c0_i32_1 = arith.constant 0 : i32
    return %c0_i32, %c0_i32_0 : i32, i32
  }
  func.func @transform_7(%arg0: i32, %arg1: i32) -> (i32, i32) {
    %c0_i32 = arith.constant 0 : i32
    %c0_i32_0 = arith.constant 0 : i32
    %c0_i32_1 = arith.constant 0 : i32
    return %c0_i32, %c0_i32_0 : i32, i32
  }
  func.func @transform_8(%arg0: i32, %arg1: i32) -> (i32, i32) {
    %c0_i32 = arith.constant 0 : i32
    %c0_i32_0 = arith.constant 0 : i32
    return %arg0, %c0_i32 : i32, i32
  }
}

</mosaic_0001>

<llo_original>
// kernel: tpu_custom_call.1
$region0: #{tpu_custom_call.1}
  #allocation0 [shape = 'u32[]', space=smem, size = 0x4, offset = 0x4, fixed_abs, tag = 'smem constant byte address 0x4 - core index']
  #allocation1 [shape = 'u32[144,128]{1,0:T(1,128)}', space=vmem, size = 0x12000, scoped, tag = 'internal scratch']
  #allocation2 [shape = 'f32[8,128]{1,0:T(8,128)}', space=vmem, size = 0x1000, scoped, tag = 'scratch operand']
  %s0 = inlined_call_operand.hbm [shape: f32[16,128], index: 0, kind: input, shape index: {}]
  %s1 = inlined_call_operand.hbm [shape: f32[16,128], index: 1, kind: input, shape index: {}]
  %s2 = inlined_call_operand.hbm [shape: f32[16,16], index: 2, kind: input, shape index: {}]
  %s3 = inlined_call_operand.hbm [shape: f32[16,128], index: 3, kind: input, shape index: {}]
  %s4 = inlined_call_operand.hbm [shape: bf16[128,128], index: 4, kind: input, shape index: {}]
  %s5 = inlined_call_operand.vmem [shape: f32[1,128], index: 5, kind: input, shape index: {}]
  %s6 = inlined_call_operand.hbm [shape: bf16[128,128], index: 6, kind: input, shape index: {}]
  %s7 = inlined_call_operand.vmem [shape: f32[1,128], index: 7, kind: input, shape index: {}]
  %s8 = inlined_call_operand.hbm [shape: f32[16,128], index: 8, kind: output, shape index: {}]
  %s9 = sld [smem:[#allocation0]]
  $region97: #{tpu_custom_call.1} parent=0
    _
  %s11 = ssub.s32 1, %s9
  %s12 = scalar_select 0, %s11, %s9
  $region1: #{tpu_custom_call.1} parent=0
    #allocation3 [shape = 'u8[8192]{0}', space=vmem, size = 0x2000, scoped, tag = 'input window, operand 0, single buffered']
    #allocation4 [shape = 's32[2]{0}', space=sflag, size = 0x8, scoped, tag = 'scoped memory for tpu_custom_call.1']
    #allocation5 [shape = 's32[2]{0}', space=sflag, size = 0x8, scoped, tag = 'scoped memory for tpu_custom_call.1']
    #allocation6 [shape = 'u8[8192]{0}', space=vmem, size = 0x2000, scoped, tag = 'input window, operand 1']
    #allocation7 [shape = 's32[2]{0}', space=sflag, size = 0x8, scoped, tag = 'scoped memory for tpu_custom_call.1']
    #allocation8 [shape = 'u8[8192]{0}', space=vmem, size = 0x2000, scoped, tag = 'input window, operand 2']
    #allocation9 [shape = 'u8[8192]{0}', space=vmem, size = 0x2000, scoped, tag = 'input window, operand 3, single buffered']
    #allocation10 [shape = 's32[1]{0}', space=sflag, size = 0x4, scoped, tag = 'scoped memory for tpu_custom_call.1']
    #allocation11 [shape = 'u8[32768]{0}', space=vmem, size = 0x8000, scoped, tag = 'input window, operand 4, single buffered']
    #allocation12 [shape = 'u8[32768]{0}', space=vmem, size = 0x8000, scoped, tag = 'input window, operand 6, single buffered']
    #allocation13 [shape = 's32[1]{0}', space=sflag, size = 0x4, scoped, tag = 'scoped memory for tpu_custom_call.1']
    #allocation14 [shape = 'u8[8192]{0}', space=vmem, size = 0x2000, scoped, tag = 'output window, operand 0']
    %13 = vsyncpa [#allocation4], 0
    %14 = vsyncpa [#allocation7], 0
    %s15 = scalar_lea.sflag [#allocation7], 1
    %16 = vsyncpa %s15, 0
    %17 = vsyncpa [#allocation10], 0
    %18 = vsyncpa [#allocation13], 0
    %19 = vsyncpa [#allocation5], 0
    %s20 = scalar_lea.sflag [#allocation5], 1
    %21 = vsyncpa %s20, 0
    loop: start=0, step=1, limit=4
    $region2: #{tpu_custom_call.1} parent=1 // loop_pre_header
      _
    $region3: #{tpu_custom_call.1} parent=1 // loop_header
      %s23 = sphi 0, %s27
      %p24 = scmp.ge.s32.totalorder %s23, 4
      %s30 = sphi 0, %s42
      %s31 = sphi 0, %s38
      %s32 = sphi 0, %s30
      %s33 = sphi 0, %s31
      %s34 = sphi 0, %s32
      %s35 = sphi 0, %s33
      %s45 = sphi 0, %s47
      %s48 = sphi 0, %s45
      %s49 = sphi 0, %s48
      %s65 = sphi 0, %s49
      %s71 = sphi 0, %s73
      %s74 = sphi 0, %s71
      %s75 = sphi 0, %s74
      %s91 = sphi 0, %s75
      %s99 = sphi 0, %s101
      %s102 = sphi 0, %s99
      %s103 = sphi 0, %s102
      %s119 = sphi 0, %s103
      %s125 = sphi 0, %s127
      %s128 = sphi 0, %s125
      %s129 = sphi 0, %s128
      %s145 = sphi 0, %s129
      %s149 = sphi 0, %s149
      %s151 = sphi 0, %s149
      %s152 = sphi 0, %s151
      %s166 = sphi 0, %s152
      %s170 = sphi 0, %s170
      %s172 = sphi 0, %s170
      %s173 = sphi 0, %s172
      %s187 = sphi 0, %s173
      %s191 = sphi 0, %s191
      %s193 = sphi 0, %s191
      %s194 = sphi 0, %s193
      %s208 = sphi 0, %s194
      %s212 = sphi 0, %s212
      %s214 = sphi 0, %s212
      %s215 = sphi 0, %s214
      %s229 = sphi 0, %s215
      %s235 = sphi 0, %s237
      %s238 = sphi 0, %s235
      %s239 = sphi 0, %s238
      %s255 = sphi 0, %s239
    $region4: #{tpu_custom_call.1} parent=1 // loop_header_branch
      %26 = sbr.rel (%p24) target = $region8
    $region5: #{tpu_custom_call.1} parent=1 // loop_body
      %s28 = ssub.s32 %s23, 1
      %s29 = ssub.s32 %s23, 2
      %s36 = sadd.s32 1, %s31
      %p37 = scmp.ge.s32.totalorder %s36, 1
      %s38 = scalar_select %p37, 0, %s36
      %s39 = sadd.s32 1, %s30
      %s40 = scalar_select %p37, %s39, %s30
      %p41 = scmp.ge.s32.totalorder %s40, 2
      %s42 = scalar_select %p41, 0, %s40
      %s43 = ssub.s32 %s31, %s38
      %p44 = scmp.eq.s32.totalorder %s43, 0
      %s46 = sadd.s32 %s45, 1
      %s47 = scalar_select %p44, %s45, %s46
      %p50 = pneg %p44
      %p51 = scmp.eq.s32.totalorder %s23, 1
      %p52 = por %p50, %p51
      %p53 = scmp.ne.s32.totalorder %s45, %s48
      %p54 = scmp.eq.s32.totalorder %s23, 0
      %p55 = por %p53, %p54
      %p56 = scmp.ne.s32.totalorder %s45, %s48
      %p57 = scmp.eq.s32.totalorder %s28, 1
      %p58 = por %p56, %p57
      %p59 = scmp.ne.s32.totalorder %s48, %s49
      %p60 = scmp.eq.s32.totalorder %s28, 0
      %p61 = por %p59, %p60
      %p62 = scmp.ne.s32.totalorder %s48, %s49
      %p63 = scmp.eq.s32.totalorder %s29, 1
      %p64 = por %p62, %p63
      %p66 = scmp.ne.s32.totalorder %s49, %s65
      %p67 = scmp.eq.s32.totalorder %s29, 0
      %p68 = por %p66, %p67
      %s69 = ssub.s32 %s30, %s42
      %p70 = scmp.eq.s32.totalorder %s69, 0
      %s72 = sadd.s32 %s71, 1
      %s73 = scalar_select %p70, %s71, %s72
      %p76 = pneg %p70
      %p77 = scmp.eq.s32.totalorder %s23, 1
      %p78 = por %p76, %p77
      %p79 = scmp.ne.s32.totalorder %s71, %s74
      %p80 = scmp.eq.s32.totalorder %s23, 0
      %p81 = por %p79, %p80
      %p82 = scmp.ne.s32.totalorder %s71, %s74
      %p83 = scmp.eq.s32.totalorder %s28, 1
      %p84 = por %p82, %p83
      %p85 = scmp.ne.s32.totalorder %s74, %s75
      %p86 = scmp.eq.s32.totalorder %s28, 0
      %p87 = por %p85, %p86
      %p88 = scmp.ne.s32.totalorder %s74, %s75
      %p89 = scmp.eq.s32.totalorder %s29, 1
      %p90 = por %p88, %p89
      %p92 = scmp.ne.s32.totalorder %s75, %s91
      %p93 = scmp.eq.s32.totalorder %s29, 0
      %p94 = por %p92, %p93
      %s95 = ssub.s32 %s30, %s42
      %s96 = ssub.s32 %s31, %s38
      %s97 = sor.u32 %s95, %s96
      %p98 = scmp.eq.s32.totalorder %s97, 0
      %s100 = sadd.s32 %s99, 1
      %s101 = scalar_select %p98, %s99, %s100
      %p104 = pneg %p98
      %p105 = scmp.eq.s32.totalorder %s23, 1
      %p106 = por %p104, %p105
      %p107 = scmp.ne.s32.totalorder %s99, %s102
      %p108 = scmp.eq.s32.totalorder %s23, 0
      %p109 = por %p107, %p108
      %p110 = scmp.ne.s32.totalorder %s99, %s102
      %p111 = scmp.eq.s32.totalorder %s28, 1
      %p112 = por %p110, %p111
      %p113 = scmp.ne.s32.totalorder %s102, %s103
      %p114 = scmp.eq.s32.totalorder %s28, 0
      %p115 = por %p113, %p114
      %p116 = scmp.ne.s32.totalorder %s102, %s103
      %p117 = scmp.eq.s32.totalorder %s29, 1
      %p118 = por %p116, %p117
      %p120 = scmp.ne.s32.totalorder %s103, %s119
      %p121 = scmp.eq.s32.totalorder %s29, 0
      %p122 = por %p120, %p121
      %s123 = ssub.s32 %s31, %s38
      %p124 = scmp.eq.s32.totalorder %s123, 0
      %s126 = sadd.s32 %s125, 1
      %s127 = scalar_select %p124, %s125, %s126
      %p130 = pneg %p124
      %p131 = scmp.eq.s32.totalorder %s23, 1
      %p132 = por %p130, %p131
      %p133 = scmp.ne.s32.totalorder %s125, %s128
      %p134 = scmp.eq.s32.totalorder %s23, 0
      %p135 = por %p133, %p134
      %p136 = scmp.ne.s32.totalorder %s125, %s128
      %p137 = scmp.eq.s32.totalorder %s28, 1
      %p138 = por %p136, %p137
      %p139 = scmp.ne.s32.totalorder %s128, %s129
      %p140 = scmp.eq.s32.totalorder %s28, 0
      %p141 = por %p139, %p140
      %p142 = scmp.ne.s32.totalorder %s128, %s129
      %p143 = scmp.eq.s32.totalorder %s29, 1
      %p144 = por %p142, %p143
      %p146 = scmp.ne.s32.totalorder %s129, %s145
      %p147 = scmp.eq.s32.totalorder %s29, 0
      %p148 = por %p146, %p147
      %s150 = sadd.s32 %s149, 1
      %p153 = scmp.eq.s32.totalorder %s23, 1
      %p154 = scmp.ne.s32.totalorder %s149, %s151
      %p155 = scmp.eq.s32.totalorder %s23, 0
      %p156 = por %p154, %p155
      %p157 = scmp.ne.s32.totalorder %s149, %s151
      %p158 = scmp.eq.s32.totalorder %s28, 1
      %p159 = por %p157, %p158
      %p160 = scmp.ne.s32.totalorder %s151, %s152
      %p161 = scmp.eq.s32.totalorder %s28, 0
      %p162 = por %p160, %p161
      %p163 = scmp.ne.s32.totalorder %s151, %s152
      %p164 = scmp.eq.s32.totalorder %s29, 1
      %p165 = por %p163, %p164
      %p167 = scmp.ne.s32.totalorder %s152, %s166
      %p168 = scmp.eq.s32.totalorder %s29, 0
      %p169 = por %p167, %p168
      %s171 = sadd.s32 %s170, 1
      %p174 = scmp.eq.s32.totalorder %s23, 1
      %p175 = scmp.ne.s32.totalorder %s170, %s172
      %p176 = scmp.eq.s32.totalorder %s23, 0
      %p177 = por %p175, %p176
      %p178 = scmp.ne.s32.totalorder %s170, %s172
      %p179 = scmp.eq.s32.totalorder %s28, 1
      %p180 = por %p178, %p179
      %p181 = scmp.ne.s32.totalorder %s172, %s173
      %p182 = scmp.eq.s32.totalorder %s28, 0
      %p183 = por %p181, %p182
      %p184 = scmp.ne.s32.totalorder %s172, %s173
      %p185 = scmp.eq.s32.totalorder %s29, 1
      %p186 = por %p184, %p185
      %p188 = scmp.ne.s32.totalorder %s173, %s187
      %p189 = scmp.eq.s32.totalorder %s29, 0
      %p190 = por %p188, %p189
      %s192 = sadd.s32 %s191, 1
      %p195 = scmp.eq.s32.totalorder %s23, 1
      %p196 = scmp.ne.s32.totalorder %s191, %s193
      %p197 = scmp.eq.s32.totalorder %s23, 0
      %p198 = por %p196, %p197
      %p199 = scmp.ne.s32.totalorder %s191, %s193
      %p200 = scmp.eq.s32.totalorder %s28, 1
      %p201 = por %p199, %p200
      %p202 = scmp.ne.s32.totalorder %s193, %s194
      %p203 = scmp.eq.s32.totalorder %s28, 0
      %p204 = por %p202, %p203
      %p205 = scmp.ne.s32.totalorder %s193, %s194
      %p206 = scmp.eq.s32.totalorder %s29, 1
      %p207 = por %p205, %p206
      %p209 = scmp.ne.s32.totalorder %s194, %s208
      %p210 = scmp.eq.s32.totalorder %s29, 0
      %p211 = por %p209, %p210
      %s213 = sadd.s32 %s212, 1
      %p216 = scmp.eq.s32.totalorder %s23, 1
      %p217 = scmp.ne.s32.totalorder %s212, %s214
      %p218 = scmp.eq.s32.totalorder %s23, 0
      %p219 = por %p217, %p218
      %p220 = scmp.ne.s32.totalorder %s212, %s214
      %p221 = scmp.eq.s32.totalorder %s28, 1
      %p222 = por %p220, %p221
      %p223 = scmp.ne.s32.totalorder %s214, %s215
      %p224 = scmp.eq.s32.totalorder %s28, 0
      %p225 = por %p223, %p224
      %p226 = scmp.ne.s32.totalorder %s214, %s215
      %p227 = scmp.eq.s32.totalorder %s29, 1
      %p228 = por %p226, %p227
      %p230 = scmp.ne.s32.totalorder %s215, %s229
      %p231 = scmp.eq.s32.totalorder %s29, 0
      %p232 = por %p230, %p231
      %s233 = ssub.s32 %s30, %s42
      %p234 = scmp.eq.s32.totalorder %s233, 0
      %s236 = sadd.s32 %s235, 1
      %s237 = scalar_select %p234, %s235, %s236
      %p240 = pneg %p234
      %p241 = scmp.eq.s32.totalorder %s23, 1
      %p242 = por %p240, %p241
      %p243 = scmp.ne.s32.totalorder %s235, %s238
      %p244 = scmp.eq.s32.totalorder %s23, 0
      %p245 = por %p243, %p244
      %p246 = scmp.ne.s32.totalorder %s235, %s238
      %p247 = scmp.eq.s32.totalorder %s28, 1
      %p248 = por %p246, %p247
      %p249 = scmp.ne.s32.totalorder %s238, %s239
      %p250 = scmp.eq.s32.totalorder %s28, 0
      %p251 = por %p249, %p250
      %p252 = scmp.ne.s32.totalorder %s238, %s239
      %p253 = scmp.eq.s32.totalorder %s29, 1
      %p254 = por %p252, %p253
      %p256 = scmp.ne.s32.totalorder %s239, %s255
      %p257 = scmp.eq.s32.totalorder %s29, 0
      %p258 = por %p256, %p257
      %p259 = scmp.le.s32.totalorder 1, %s23
      %p260 = scmp.lt.s32.totalorder %s23, 3
      %p261 = pnand %p259, %p260
      %p262 = pneg %p261
      // Predicated region
      $region9: #{tpu_custom_call.1} parent=5 // pred_check
        _
      $region10: #{tpu_custom_call.1} parent=5 // pred_check_branch
        %264 = sbr.rel (%p261) target = $region12
      $region11: #{tpu_custom_call.1} parent=5 // pred_region
        %s265 = ssub.s32 %s23, 1
        // Predicated region
        $region13: #{tpu_custom_call.1} parent=11 // pred_check
          %p266 = pneg %p61
        $region14: #{tpu_custom_call.1} parent=11 // pred_check_branch
          %268 = sbr.rel (%p266) target = $region16
        $region15: #{tpu_custom_call.1} parent=11 // pred_region
          %s269 = smul.u32 2, %s33
          %s271 = ssub.s32 256, 256
          %272 = vsyncadd [#allocation4], %s271
          %s273 = smul.addr %s269, 128
          %s274 = scalar_lea.hbm %s0, %s273
          %s275 = sshll.u32 [#allocation3], 4
          %s276 = int_to_ptr.vmem [resolvable:$true] %s275
          %281 = dma.hbm_to_vmem [thread:$0]  %s274, 256, %s276, [#allocation4], 128, 128, 8
        $region16: #{tpu_custom_call.1} parent=11 // pred_fallthru
          _
        // Predicated region
        $region17: #{tpu_custom_call.1} parent=11 // pred_check
          %p282 = pneg %p141
        $region18: #{tpu_custom_call.1} parent=11 // pred_check_branch
          %284 = sbr.rel (%p282) target = $region20
        $region19: #{tpu_custom_call.1} parent=11 // pred_region
          %s285 = smul.u32 2, %s33
          %s287 = ssub.s32 256, 256
          %288 = vsyncadd [#allocation10], %s287
          %s289 = smul.addr %s285, 128
          %s290 = scalar_lea.hbm %s3, %s289
          %s291 = sshll.u32 [#allocation9], 4
          %s292 = int_to_ptr.vmem [resolvable:$true] %s291
          %297 = dma.hbm_to_vmem [thread:$0]  %s290, 256, %s292, [#allocation10], 128, 128, 8
        $region20: #{tpu_custom_call.1} parent=11 // pred_fallthru
          _
        // Predicated region
        $region21: #{tpu_custom_call.1} parent=11 // pred_check
          %p298 = pneg %p162
        $region22: #{tpu_custom_call.1} parent=11 // pred_check_branch
          %300 = sbr.rel (%p298) target = $region24
        $region23: #{tpu_custom_call.1} parent=11 // pred_region
          %s302 = ssub.s32 1024, 1024
          %303 = vsyncadd [#allocation10], %s302
          %s304 = sshll.u32 [#allocation11], 4
          %s305 = int_to_ptr.vmem [resolvable:$true] %s304
          %310 = dma.hbm_to_vmem [thread:$0]  %s4, 1024, %s305, [#allocation10], 64, 64, 4
        $region24: #{tpu_custom_call.1} parent=11 // pred_fallthru
          _
        // Predicated region
        $region25: #{tpu_custom_call.1} parent=11 // pred_check
          %p311 = pneg %p183
        $region26: #{tpu_custom_call.1} parent=11 // pred_check_branch
          %313 = sbr.rel (%p311) target = $region28
        $region27: #{tpu_custom_call.1} parent=11 // pred_region
          _
        $region28: #{tpu_custom_call.1} parent=11 // pred_fallthru
          _
        // Predicated region
        $region29: #{tpu_custom_call.1} parent=11 // pred_check
          %p314 = pneg %p204
        $region30: #{tpu_custom_call.1} parent=11 // pred_check_branch
          %316 = sbr.rel (%p314) target = $region32
        $region31: #{tpu_custom_call.1} parent=11 // pred_region
          %s318 = ssub.s32 1024, 1024
          %319 = vsyncadd [#allocation13], %s318
          %s320 = sshll.u32 [#allocation12], 4
          %s321 = int_to_ptr.vmem [resolvable:$true] %s320
          %326 = dma.hbm_to_vmem [thread:$0]  %s6, 1024, %s321, [#allocation13], 64, 64, 4
        $region32: #{tpu_custom_call.1} parent=11 // pred_fallthru
          _
        // Predicated region
        $region33: #{tpu_custom_call.1} parent=11 // pred_check
          %p327 = pneg %p225
        $region34: #{tpu_custom_call.1} parent=11 // pred_check_branch
          %329 = sbr.rel (%p327) target = $region36
        $region35: #{tpu_custom_call.1} parent=11 // pred_region
          _
        $region36: #{tpu_custom_call.1} parent=11 // pred_fallthru
          _
      $region12: #{tpu_custom_call.1} parent=5 // pred_fallthru
        _
      %p330 = scmp.lt.s32.totalorder %s23, 2
      // Predicated region
      $region37: #{tpu_custom_call.1} parent=5 // pred_check
        %p331 = pneg %p330
      $region38: #{tpu_custom_call.1} parent=5 // pred_check_branch
        %333 = sbr.rel (%p331) target = $region40
      $region39: #{tpu_custom_call.1} parent=5 // pred_region
        // Predicated region
        $region41: #{tpu_custom_call.1} parent=39 // pred_check
          %p334 = pneg %p81
        $region42: #{tpu_custom_call.1} parent=39 // pred_check_branch
          %336 = sbr.rel (%p334) target = $region44
        $region43: #{tpu_custom_call.1} parent=39 // pred_region
          %s337 = sand.u32 %s23, 1
          %s338 = scalar_lea.sflag [#allocation7], %s337
          %s339 = sand.u32 %s71, 1
          %s340 = smul.addr %s339, 8
          %s341 = scalar_lea.vmem [#allocation6], %s340
          %s343 = ssub.s32 128, 128
          %344 = vsyncadd %s338, %s343
          %s345 = smul.addr %s30, 128
          %s346 = scalar_lea.hbm %s1, %s345
          %s348 = sshll.u32 %s341, 4
          %s349 = int_to_ptr.vmem [resolvable:$true] %s348
          %351 = dma.hbm_to_vmem [thread:$0]  %s346, 128, %s349, %s338
        $region44: #{tpu_custom_call.1} parent=39 // pred_fallthru
          _
        // Predicated region
        $region45: #{tpu_custom_call.1} parent=39 // pred_check
          %p352 = pneg %p109
        $region46: #{tpu_custom_call.1} parent=39 // pred_check_branch
          %354 = sbr.rel (%p352) target = $region48
        $region47: #{tpu_custom_call.1} parent=39 // pred_region
          %s355 = sand.u32 %s23, 1
          %s356 = scalar_lea.sflag [#allocation7], %s355
          %s357 = sand.u32 %s99, 1
          %s358 = smul.addr %s357, 8
          %s359 = scalar_lea.vmem [#allocation8], %s358
          %s361 = ssub.s32 128, 128
          %362 = vsyncadd %s356, %s361
          %s363 = sadd.s32 %s31, %s30
          %s364 = smul.addr %s363, 128
          %s365 = scalar_lea.hbm %s2, %s364
          %s367 = sshll.u32 %s359, 4
          %s368 = int_to_ptr.vmem [resolvable:$true] %s367
          %370 = dma.hbm_to_vmem [thread:$0]  %s365, 128, %s368, %s356
        $region48: #{tpu_custom_call.1} parent=39 // pred_fallthru
          _
      $region40: #{tpu_custom_call.1} parent=5 // pred_fallthru
        _
      %p371 = scmp.le.s32.totalorder 1, %s23
      %p372 = scmp.lt.s32.totalorder %s23, 3
      %p373 = pnand %p371, %p372
      %p374 = pneg %p373
      // Predicated region
      $region49: #{tpu_custom_call.1} parent=5 // pred_check
        _
      $region50: #{tpu_custom_call.1} parent=5 // pred_check_branch
        %376 = sbr.rel (%p373) target = $region52
      $region51: #{tpu_custom_call.1} parent=5 // pred_region
        %s377 = ssub.s32 %s23, 1
        // Predicated region
        $region53: #{tpu_custom_call.1} parent=51 // pred_check
          %p378 = pneg %p61
        $region54: #{tpu_custom_call.1} parent=51 // pred_check_branch
          %380 = sbr.rel (%p378) target = $region56
        $region55: #{tpu_custom_call.1} parent=51 // pred_region
          %381 = dma.done [#allocation4], 256
        $region56: #{tpu_custom_call.1} parent=51 // pred_fallthru
          _
        %s382 = sand.u32 %s28, 1
        %s383 = scalar_lea.sflag [#allocation7], %s382
        %s384 = sand.u32 %s74, 1
        %s385 = smul.addr %s384, 8
        %s386 = scalar_lea.vmem [#allocation6], %s385
        // Predicated region
        $region57: #{tpu_custom_call.1} parent=51 // pred_check
          %p387 = pneg %p87
        $region58: #{tpu_custom_call.1} parent=51 // pred_check_branch
          %389 = sbr.rel (%p387) target = $region60
        $region59: #{tpu_custom_call.1} parent=51 // pred_region
          %390 = dma.done %s383, 128
        $region60: #{tpu_custom_call.1} parent=51 // pred_fallthru
          _
        %s391 = sand.u32 %s28, 1
        %s392 = scalar_lea.sflag [#allocation7], %s391
        %s393 = sand.u32 %s102, 1
        %s394 = smul.addr %s393, 8
        %s395 = scalar_lea.vmem [#allocation8], %s394
        // Predicated region
        $region61: #{tpu_custom_call.1} parent=51 // pred_check
          %p396 = pneg %p115
        $region62: #{tpu_custom_call.1} parent=51 // pred_check_branch
          %398 = sbr.rel (%p396) target = $region64
        $region63: #{tpu_custom_call.1} parent=51 // pred_region
          %399 = dma.done %s392, 128
        $region64: #{tpu_custom_call.1} parent=51 // pred_fallthru
          _
        // Predicated region
        $region65: #{tpu_custom_call.1} parent=51 // pred_check
          %p400 = pneg %p141
        $region66: #{tpu_custom_call.1} parent=51 // pred_check_branch
          %402 = sbr.rel (%p400) target = $region68
        $region67: #{tpu_custom_call.1} parent=51 // pred_region
          %403 = dma.done [#allocation10], 256
        $region68: #{tpu_custom_call.1} parent=51 // pred_fallthru
          _
        // Predicated region
        $region69: #{tpu_custom_call.1} parent=51 // pred_check
          %p404 = pneg %p162
        $region70: #{tpu_custom_call.1} parent=51 // pred_check_branch
          %406 = sbr.rel (%p404) target = $region72
        $region71: #{tpu_custom_call.1} parent=51 // pred_region
          %407 = dma.done [#allocation10], 1024
        $region72: #{tpu_custom_call.1} parent=51 // pred_fallthru
          _
        // Predicated region
        $region73: #{tpu_custom_call.1} parent=51 // pred_check
          %p408 = pneg %p204
        $region74: #{tpu_custom_call.1} parent=51 // pred_check_branch
          %410 = sbr.rel (%p408) target = $region76
        $region75: #{tpu_custom_call.1} parent=51 // pred_region
          %411 = dma.done [#allocation13], 1024
        $region76: #{tpu_custom_call.1} parent=51 // pred_fallthru
          _
        %p412 = pneg %p61
        %p413 = pneg %p58
        %s414 = sand.u32 %s28, 1
        %s415 = scalar_lea.sflag [#allocation7], %s414
        %s416 = sand.u32 %s74, 1
        %s417 = smul.addr %s416, 8
        %s418 = scalar_lea.vmem [#allocation6], %s417
        %p419 = pneg %p87
        %p420 = pneg %p84
        %s421 = sand.u32 %s28, 1
        %s422 = scalar_lea.sflag [#allocation7], %s421
        %s423 = sand.u32 %s102, 1
        %s424 = smul.addr %s423, 8
        %s425 = scalar_lea.vmem [#allocation8], %s424
        %p426 = pneg %p115
        %p427 = pneg %p112
        %p428 = pneg %p141
        %p429 = pneg %p138
        %p430 = pneg %p162
        %p431 = pneg %p159
        %p432 = pneg %p183
        %p433 = pneg %p180
        %p434 = pneg %p204
        %p435 = pneg %p201
        %p436 = pneg %p225
        %p437 = pneg %p222
        %p438 = pneg %p251
        %p439 = pneg %p248
        %s440 = sand.u32 %s238, 1
        %s441 = scalar_lea.sflag [#allocation5], %s440
        %s442 = sand.u32 %s238, 1
        %s443 = smul.addr %s442, 8
        %s444 = scalar_lea.vmem [#allocation14], %s443
        %s445 = smul.u32 2, %s33
        %s446 = smul.u32 2, %s33
        %p448 = scmp.eq.s32.totalorder %s33, 0
        // Predicated region
        $region77: #{tpu_custom_call.1} parent=51 // pred_check
          %p449 = pneg %p448
        $region78: #{tpu_custom_call.1} parent=51 // pred_check_branch
          %451 = sbr.rel (%p449) target = $region80
        $region79: #{tpu_custom_call.1} parent=51 // pred_region
          %452 = vst [vmem:[#allocation2] sm:$0xff] 0.0
        $region80: #{tpu_custom_call.1} parent=51 // pred_fallthru
          _
        %v453 = vld [vmem:[%s386] sm:$0xff]
        %v454 = vld [vmem:[%s395] sm:$0xff]
        %v455 = vld [vmem:[#allocation9] sm:$0xff]
        %v456 = vld [vmem:[#allocation9 + $0x8] sm:$0xff]
        %v457 = vld [vmem:[#allocation3] sm:$0xff]
        %v458 = vld [vmem:[#allocation3 + $0x8] sm:$0xff]
        %v459 = vpack.c.bf16 %v454, %v454
        %v460 = vpack.c.bf16 %v456, %v455
        %vm461 = vcmask 130048
        %v463 = vsel %vm461, %v459, 0
        %465 = vmatprep.subr.bf16.mxu0 0
        %466 = vmatpush1.bf16.msra.mxu0 %v460
        %467 = vmatprep.subr.bf16.mxu0 0
        %468 = vmatpush1.bf16.msra.mxu0 0
        %469 = vmatprep.subr.bf16.mxu0 0
        %470 = vmatpush1.bf16.msra.mxu0 0
        %471 = vmatprep.subr.bf16.mxu0 0
        %472 = vmatpush1.bf16.msra.mxu0 0
        %473 = vmatprep.subr.bf16.mxu0 0
        %474 = vmatpush1.bf16.msra.mxu0 0
        %475 = vmatprep.subr.bf16.mxu0 0
        %476 = vmatpush1.bf16.msra.mxu0 0
        %477 = vmatprep.subr.bf16.mxu0 0
        %478 = vmatpush1.bf16.msra.mxu0 0
        %479 = vmatprep.subr.bf16.mxu0 0
        %480 = vmatpush1.bf16.msra.mxu0 0
        %481 = vmatprep.subr.bf16.mxu0 0
        %482 = vmatpush1.bf16.msra.mxu0 0
        %483 = vmatprep.subr.bf16.mxu0 0
        %484 = vmatpush1.bf16.msra.mxu0 0
        %485 = vmatprep.subr.bf16.mxu0 0
        %486 = vmatpush1.bf16.msra.mxu0 0
        %487 = vmatprep.subr.bf16.mxu0 0
        %488 = vmatpush1.bf16.msra.mxu0 0
        %489 = vmatprep.subr.bf16.mxu0 0
        %490 = vmatpush1.bf16.msra.mxu0 0
        %491 = vmatprep.subr.bf16.mxu0 0
        %492 = vmatpush1.bf16.msra.mxu0 0
        %493 = vmatprep.subr.bf16.mxu0 0
        %494 = vmatpush1.bf16.msra.mxu0 0
        %495 = vmatprep.subr.bf16.mxu0 0
        %496 = vmatpush1.bf16.msra.mxu0 0
        %497 = vmatprep.mubr.bf16.mxu0 0
        %498 = vmatmul.mubr.bf16.gmra.mrb[0].mxu0 %v463
        %v499 = vpop.f32.mrb[0].mxu0
        %v500 = vadd.f32 0.0, %v499
        %v501 = vpop.f32.mrb[0].mxu0
        %v502 = vpop.f32.mrb[0].mxu0
        %v503 = vpop.f32.mrb[0].mxu0
        %504 = vdwg.mxu0
        %v505 = vld [vmem:[%s5] sm:$0x1]
        %v507 = vlaneseq
        %v508 = vshrl.u32 %v507, 7
        %v509 = vsub.s32 0, %v508
        %v510 = vrot.slane %v505, %v509
        %v512 = vmul.f32 %v500, %v510
        %v514 = vcombine.high %v453, %v453
        %v516 = vunpack.c.l.s4 1966171168
        %v517 = vunpack.c.0.s8 %v516
        %v518 = vlaneseq
        %v519 = vshrl.u32 %v518, 7
        %v520 = vsub.s32 %v517, %v519
        %v521 = vrot.slane %v453, %v520
        %v523 = vunpack.c.l.s4 1966171168
        %v524 = vunpack.c.0.s8 %v523
        %v525 = vlaneseq
        %v526 = vshrl.u32 %v525, 7
        %v527 = vsub.s32 %v524, %v526
        %v528 = vrot.slane %v514, %v527
        %v529 = vcombine.high %v521, %v521
        %v530 = vcombine.high %v528, %v528
        %v532 = vunpack.c.l.s4 1966171168
        %v533 = vunpack.c.0.s8 %v532
        %v534 = vlaneseq
        %v535 = vshrl.u32 %v534, 7
        %v536 = vsub.s32 %v533, %v535
        %v537 = vrot.slane %v521, %v536
        %v539 = vunpack.c.l.s4 1966171168
        %v540 = vunpack.c.0.s8 %v539
        %v541 = vlaneseq
        %v542 = vshrl.u32 %v541, 7
        %v543 = vsub.s32 %v540, %v542
        %v544 = vrot.slane %v528, %v543
        %v546 = vunpack.c.l.s4 1966171168
        %v547 = vunpack.c.0.s8 %v546
        %v548 = vlaneseq
        %v549 = vshrl.u32 %v548, 7
        %v550 = vsub.s32 %v547, %v549
        %v551 = vrot.slane %v529, %v550
        %v553 = vunpack.c.l.s4 1966171168
        %v554 = vunpack.c.0.s8 %v553
        %v555 = vlaneseq
        %v556 = vshrl.u32 %v555, 7
        %v557 = vsub.s32 %v554, %v556
        %v558 = vrot.slane %v530, %v557
        %v559 = vcombine.high %v537, %v537
        %v560 = vcombine.high %v544, %v544
        %v561 = vcombine.high %v551, %v551
        %v562 = vcombine.high %v558, %v558
        %v563 = vlaneseq
        %v564 = vshrl.u32 %v563, 7
        %v565 = vsub.s32 0, %v564
        %v566 = vrot.slane %v537, %v565
        %v567 = vlaneseq
        %v568 = vshrl.u32 %v567, 7
        %v569 = vsub.s32 0, %v568
        %v570 = vrot.slane %v551, %v569
        %v571 = vlaneseq
        %v572 = vshrl.u32 %v571, 7
        %v573 = vsub.s32 0, %v572
        %v574 = vrot.slane %v559, %v573
        %v575 = vlaneseq
        %v576 = vshrl.u32 %v575, 7
        %v577 = vsub.s32 0, %v576
        %v578 = vrot.slane %v561, %v577
        %v579 = vlaneseq
        %v580 = vshrl.u32 %v579, 7
        %v581 = vsub.s32 0, %v580
        %v582 = vrot.slane %v544, %v581
        %v583 = vlaneseq
        %v584 = vshrl.u32 %v583, 7
        %v585 = vsub.s32 0, %v584
        %v586 = vrot.slane %v558, %v585
        %v587 = vlaneseq
        %v588 = vshrl.u32 %v587, 7
        %v589 = vsub.s32 0, %v588
        %v590 = vrot.slane %v560, %v589
        %v591 = vlaneseq
        %v592 = vshrl.u32 %v591, 7
        %v593 = vsub.s32 0, %v592
        %v594 = vrot.slane %v562, %v593
        %v603 = vsub.f32 %v457, %v566
        %v604 = vsub.f32 %v458, %v566
        %v605 = vsub.f32 %v457, %v570
        %v606 = vsub.f32 %v458, %v570
        %v607 = vsub.f32 %v457, %v574
        %v608 = vsub.f32 %v458, %v574
        %v609 = vsub.f32 %v457, %v578
        %v610 = vsub.f32 %v458, %v578
        %v611 = vsub.f32 %v457, %v582
        %v612 = vsub.f32 %v458, %v582
        %v613 = vsub.f32 %v457, %v586
        %v614 = vsub.f32 %v458, %v586
        %v615 = vsub.f32 %v457, %v590
        %v616 = vsub.f32 %v458, %v590
        %v617 = vsub.f32 %v457, %v594
        %v618 = vsub.f32 %v458, %v594
        %v619 = vmax.f32 %v603, 0.0
        %v620 = vmax.f32 %v604, 0.0
        %v621 = vmax.f32 %v605, 0.0
        %v622 = vmax.f32 %v606, 0.0
        %v623 = vmax.f32 %v607, 0.0
        %v624 = vmax.f32 %v608, 0.0
        %v625 = vmax.f32 %v609, 0.0
        %v626 = vmax.f32 %v610, 0.0
        %v627 = vmax.f32 %v611, 0.0
        %v628 = vmax.f32 %v612, 0.0
        %v629 = vmax.f32 %v613, 0.0
        %v630 = vmax.f32 %v614, 0.0
        %v631 = vmax.f32 %v615, 0.0
        %v632 = vmax.f32 %v616, 0.0
        %v633 = vmax.f32 %v617, 0.0
        %v634 = vmax.f32 %v618, 0.0
        %v635 = vlaneseq
        %v636 = vshrl.u32 %v635, 7
        %v637 = vsub.s32 0, %v636
        %v638 = vrot.slane %v454, %v637
        %640 = vbcast.lane.b32.xlu0 %v638, 256
        %v641 = vpop.permute.xlu0 %640
        %s643 = sor.u32 256, 8
        %644 = vbcast.lane.b32.xlu0 %v638, %s643
        %v645 = vpop.permute.xlu0 %644
        %v646 = vlaneseq
        %v647 = vshrl.u32 %v646, 7
        %v648 = vsub.s32 1, %v647
        %v649 = vrot.slane %v454, %v648
        %651 = vbcast.lane.b32.xlu0 %v649, 256
        %v652 = vpop.permute.xlu0 %651
        %s654 = sor.u32 256, 8
        %655 = vbcast.lane.b32.xlu0 %v649, %s654
        %v656 = vpop.permute.xlu0 %655
        %v657 = vlaneseq
        %v658 = vshrl.u32 %v657, 7
        %v659 = vsub.s32 2, %v658
        %v660 = vrot.slane %v454, %v659
        %662 = vbcast.lane.b32.xlu0 %v660, 256
        %v663 = vpop.permute.xlu0 %662
        %s665 = sor.u32 256, 8
        %666 = vbcast.lane.b32.xlu0 %v660, %s665
        %v667 = vpop.permute.xlu0 %666
        %v668 = vlaneseq
        %v669 = vshrl.u32 %v668, 7
        %v670 = vsub.s32 3, %v669
        %v671 = vrot.slane %v454, %v670
        %673 = vbcast.lane.b32.xlu0 %v671, 256
        %v674 = vpop.permute.xlu0 %673
        %s676 = sor.u32 256, 8
        %677 = vbcast.lane.b32.xlu0 %v671, %s676
        %v678 = vpop.permute.xlu0 %677
        %v679 = vlaneseq
        %v680 = vshrl.u32 %v679, 7
        %v681 = vsub.s32 4, %v680
        %v682 = vrot.slane %v454, %v681
        %684 = vbcast.lane.b32.xlu0 %v682, 256
        %v685 = vpop.permute.xlu0 %684
        %s687 = sor.u32 256, 8
        %688 = vbcast.lane.b32.xlu0 %v682, %s687
        %v689 = vpop.permute.xlu0 %688
        %v690 = vlaneseq
        %v691 = vshrl.u32 %v690, 7
        %v692 = vsub.s32 5, %v691
        %v693 = vrot.slane %v454, %v692
        %695 = vbcast.lane.b32.xlu0 %v693, 256
        %v696 = vpop.permute.xlu0 %695
        %s698 = sor.u32 256, 8
        %699 = vbcast.lane.b32.xlu0 %v693, %s698
        %v700 = vpop.permute.xlu0 %699
        %v701 = vlaneseq
        %v702 = vshrl.u32 %v701, 7
        %v703 = vsub.s32 6, %v702
        %v704 = vrot.slane %v454, %v703
        %706 = vbcast.lane.b32.xlu0 %v704, 256
        %v707 = vpop.permute.xlu0 %706
        %s709 = sor.u32 256, 8
        %710 = vbcast.lane.b32.xlu0 %v704, %s709
        %v711 = vpop.permute.xlu0 %710
        %v712 = vlaneseq
        %v713 = vshrl.u32 %v712, 7
        %v714 = vsub.s32 7, %v713
        %v715 = vrot.slane %v454, %v714
        %717 = vbcast.lane.b32.xlu0 %v715, 256
        %v718 = vpop.permute.xlu0 %717
        %s720 = sor.u32 256, 8
        %721 = vbcast.lane.b32.xlu0 %v715, %s720
        %v722 = vpop.permute.xlu0 %721
        %v723 = vmul.f32 %v619, %v641
        %v724 = vmul.f32 %v620, %v645
        %v725 = vmul.f32 %v621, %v652
        %v726 = vmul.f32 %v622, %v656
        %v727 = vmul.f32 %v623, %v663
        %v728 = vmul.f32 %v624, %v667
        %v729 = vmul.f32 %v625, %v674
        %v730 = vmul.f32 %v626, %v678
        %v731 = vmul.f32 %v627, %v685
        %v732 = vmul.f32 %v628, %v689
        %v733 = vmul.f32 %v629, %v696
        %v734 = vmul.f32 %v630, %v700
        %v735 = vmul.f32 %v631, %v707
        %v736 = vmul.f32 %v632, %v711
        %v737 = vmul.f32 %v633, %v718
        %v738 = vmul.f32 %v634, %v722
        %v739 = vpack.c.bf16 %v724, %v723
        %v740 = vpack.c.bf16 %v726, %v725
        %v741 = vpack.c.bf16 %v728, %v727
        %v742 = vpack.c.bf16 %v730, %v729
        %v743 = vpack.c.bf16 %v732, %v731
        %v744 = vpack.c.bf16 %v734, %v733
        %v745 = vpack.c.bf16 %v736, %v735
        %v746 = vpack.c.bf16 %v738, %v737
        %v747 = vld [vmem:[#allocation11] sm:$0xf]
        %v748 = vld [vmem:[#allocation11 + $0x4] sm:$0xf]
        %v749 = vld [vmem:[#allocation11 + $0x8] sm:$0xf]
        %v750 = vld [vmem:[#allocation11 + $0xc] sm:$0xf]
        %v751 = vld [vmem:[#allocation11 + $0x10] sm:$0xf]
        %v752 = vld [vmem:[#allocation11 + $0x14] sm:$0xf]
        %v753 = vld [vmem:[#allocation11 + $0x18] sm:$0xf]
        %v754 = vld [vmem:[#allocation11 + $0x1c] sm:$0xf]
        %v755 = vld [vmem:[#allocation11 + $0x20] sm:$0xf]
        %v756 = vld [vmem:[#allocation11 + $0x24] sm:$0xf]
        %v757 = vld [vmem:[#allocation11 + $0x28] sm:$0xf]
        %v758 = vld [vmem:[#allocation11 + $0x2c] sm:$0xf]
        %v759 = vld [vmem:[#allocation11 + $0x30] sm:$0xf]
        %v760 = vld [vmem:[#allocation11 + $0x34] sm:$0xf]
        %v761 = vld [vmem:[#allocation11 + $0x38] sm:$0xf]
        %v762 = vld [vmem:[#allocation11 + $0x3c] sm:$0xf]
        %v779 = vunpack.c.l.b16 %v747
        %v780 = vunpack.c.l.b16 %v748
        %v781 = vunpack.c.l.b16 %v749
        %v782 = vunpack.c.l.b16 %v750
        %v783 = vunpack.c.l.b16 %v751
        %v784 = vunpack.c.l.b16 %v752
        %v785 = vunpack.c.l.b16 %v753
        %v786 = vunpack.c.l.b16 %v754
        %v787 = vunpack.c.l.b16 %v755
        %v788 = vunpack.c.l.b16 %v756
        %v789 = vunpack.c.l.b16 %v757
        %v790 = vunpack.c.l.b16 %v758
        %v791 = vunpack.c.l.b16 %v759
        %v792 = vunpack.c.l.b16 %v760
        %v793 = vunpack.c.l.b16 %v761
        %v794 = vunpack.c.l.b16 %v762
        %v795 = vpack.c.b16 %v780, %v779
        %v796 = vpack.c.b16 %v782, %v781
        %v797 = vpack.c.b16 %v784, %v783
        %v798 = vpack.c.b16 %v786, %v785
        %v799 = vpack.c.b16 %v788, %v787
        %v800 = vpack.c.b16 %v790, %v789
        %v801 = vpack.c.b16 %v792, %v791
        %v802 = vpack.c.b16 %v794, %v793
        %811 = vmatprep.subr.bf16.mxu0 0
        %812 = vmatpush1.bf16.msra.mxu0 %v795
        %813 = vmatprep.subr.bf16.mxu0 0
        %814 = vmatpush1.bf16.msra.mxu0 %v796
        %815 = vmatprep.subr.bf16.mxu0 0
        %816 = vmatpush1.bf16.msra.mxu0 %v797
        %817 = vmatprep.subr.bf16.mxu0 0
        %818 = vmatpush1.bf16.msra.mxu0 %v798
        %819 = vmatprep.subr.bf16.mxu0 0
        %820 = vmatpush1.bf16.msra.mxu0 %v799
        %821 = vmatprep.subr.bf16.mxu0 0
        %822 = vmatpush1.bf16.msra.mxu0 %v800
        %823 = vmatprep.subr.bf16.mxu0 0
        %824 = vmatpush1.bf16.msra.mxu0 %v801
        %825 = vmatprep.subr.bf16.mxu0 0
        %826 = vmatpush1.bf16.msra.mxu0 %v802
        %827 = vmatprep.subr.bf16.mxu0 0
        %828 = vmatpush1.bf16.msra.mxu0 0
        %829 = vmatprep.subr.bf16.mxu0 0
        %830 = vmatpush1.bf16.msra.mxu0 0
        %831 = vmatprep.subr.bf16.mxu0 0
        %832 = vmatpush1.bf16.msra.mxu0 0
        %833 = vmatprep.subr.bf16.mxu0 0
        %834 = vmatpush1.bf16.msra.mxu0 0
        %835 = vmatprep.subr.bf16.mxu0 0
        %836 = vmatpush1.bf16.msra.mxu0 0
        %837 = vmatprep.subr.bf16.mxu0 0
        %838 = vmatpush1.bf16.msra.mxu0 0
        %839 = vmatprep.subr.bf16.mxu0 0
        %840 = vmatpush1.bf16.msra.mxu0 0
        %841 = vmatprep.subr.bf16.mxu0 0
        %842 = vmatpush1.bf16.msra.mxu0 0
        %843 = vmatprep.mubr.bf16.mxu0 0
        %844 = vmatmul.mubr.bf16.gmra.mrb[0].mxu0 %v739
        %v845 = vpop.f32.mrb[0].mxu0
        %v846 = vadd.f32 0.0, %v845
        %v847 = vpop.f32.mrb[0].mxu0
        %v848 = vpop.f32.mrb[0].mxu0
        %v849 = vadd.f32 0.0, %v848
        %v850 = vpop.f32.mrb[0].mxu0
        %851 = vmatprep.mubr.bf16.mxu0 0
        %852 = vmatmul.mubr.bf16.gmra.mrb[0].mxu0 %v740
        %v853 = vpop.f32.mrb[0].mxu0
        %v854 = vadd.f32 0.0, %v853
        %v855 = vpop.f32.mrb[0].mxu0
        %v856 = vpop.f32.mrb[0].mxu0
        %v857 = vadd.f32 0.0, %v856
        %v858 = vpop.f32.mrb[0].mxu0
        %859 = vmatprep.mubr.bf16.mxu0 0
        %860 = vmatmul.mubr.bf16.gmra.mrb[0].mxu0 %v741
        %v861 = vpop.f32.mrb[0].mxu0
        %v862 = vadd.f32 0.0, %v861
        %v863 = vpop.f32.mrb[0].mxu0
        %v864 = vpop.f32.mrb[0].mxu0
        %v865 = vadd.f32 0.0, %v864
        %v866 = vpop.f32.mrb[0].mxu0
        %867 = vmatprep.mubr.bf16.mxu0 0
        %868 = vmatmul.mubr.bf16.gmra.mrb[0].mxu0 %v742
        %v869 = vpop.f32.mrb[0].mxu0
        %v870 = vadd.f32 0.0, %v869
        %v871 = vpop.f32.mrb[0].mxu0
        %v872 = vpop.f32.mrb[0].mxu0
        %v873 = vadd.f32 0.0, %v872
        %v874 = vpop.f32.mrb[0].mxu0
        %875 = vmatprep.mubr.bf16.mxu0 0
        %876 = vmatmul.mubr.bf16.gmra.mrb[0].mxu0 %v743
        %v877 = vpop.f32.mrb[0].mxu0
        %v878 = vadd.f32 0.0, %v877
        %v879 = vpop.f32.mrb[0].mxu0
        %v880 = vpop.f32.mrb[0].mxu0
        %v881 = vadd.f32 0.0, %v880
        %v882 = vpop.f32.mrb[0].mxu0
        %883 = vmatprep.mubr.bf16.mxu0 0
        %884 = vmatmul.mubr.bf16.gmra.mrb[0].mxu0 %v744
        %v885 = vpop.f32.mrb[0].mxu0
        %v886 = vadd.f32 0.0, %v885
        %v887 = vpop.f32.mrb[0].mxu0
        %v888 = vpop.f32.mrb[0].mxu0
        %v889 = vadd.f32 0.0, %v888
        %v890 = vpop.f32.mrb[0].mxu0
        %891 = vmatprep.mubr.bf16.mxu0 0
        %892 = vmatmul.mubr.bf16.gmra.mrb[0].mxu0 %v745
        %v893 = vpop.f32.mrb[0].mxu0
        %v894 = vadd.f32 0.0, %v893
        %v895 = vpop.f32.mrb[0].mxu0
        %v896 = vpop.f32.mrb[0].mxu0
        %v897 = vadd.f32 0.0, %v896
        %v898 = vpop.f32.mrb[0].mxu0
        %899 = vmatprep.mubr.bf16.mxu0 0
        %900 = vmatmul.mubr.bf16.gmra.mrb[0].mxu0 %v746
        %v901 = vpop.f32.mrb[0].mxu0
        %v902 = vadd.f32 0.0, %v901
        %v903 = vpop.f32.mrb[0].mxu0
        %v904 = vpop.f32.mrb[0].mxu0
        %v905 = vadd.f32 0.0, %v904
        %v906 = vpop.f32.mrb[0].mxu0
        %907 = vdwg.mxu0
        %v908 = vmul.f32 %v846, %v455
        %v909 = vmul.f32 %v849, %v456
        %v910 = vmul.f32 %v854, %v455
        %v911 = vmul.f32 %v857, %v456
        %v912 = vmul.f32 %v862, %v455
        %v913 = vmul.f32 %v865, %v456
        %v914 = vmul.f32 %v870, %v455
        %v915 = vmul.f32 %v873, %v456
        %v916 = vmul.f32 %v878, %v455
        %v917 = vmul.f32 %v881, %v456
        %v918 = vmul.f32 %v886, %v455
        %v919 = vmul.f32 %v889, %v456
        %v920 = vmul.f32 %v894, %v455
        %v921 = vmul.f32 %v897, %v456
        %v922 = vmul.f32 %v902, %v455
        %v923 = vmul.f32 %v905, %v456
        %v924 = vadd.f32 %v908, %v909
        %v925 = vrot.slane %v924, 4
        %v926 = vadd.f32 %v924, %v925
        %v927 = vrot.slane %v926, 2
        %v928 = vadd.f32 %v926, %v927
        %v929 = vrot.slane %v928, 1
        %v930 = vadd.f32 %v928, %v929
        %v931 = vadd.f32 %v910, %v911
        %v932 = vrot.slane %v931, 4
        %v933 = vadd.f32 %v931, %v932
        %v934 = vrot.slane %v933, 2
        %v935 = vadd.f32 %v933, %v934
        %v936 = vrot.slane %v935, 1
        %v937 = vadd.f32 %v935, %v936
        %v938 = vadd.f32 %v912, %v913
        %v939 = vrot.slane %v938, 4
        %v940 = vadd.f32 %v938, %v939
        %v941 = vrot.slane %v940, 2
        %v942 = vadd.f32 %v940, %v941
        %v943 = vrot.slane %v942, 1
        %v944 = vadd.f32 %v942, %v943
        %v945 = vadd.f32 %v914, %v915
        %v946 = vrot.slane %v945, 4
        %v947 = vadd.f32 %v945, %v946
        %v948 = vrot.slane %v947, 2
        %v949 = vadd.f32 %v947, %v948
        %v950 = vrot.slane %v949, 1
        %v951 = vadd.f32 %v949, %v950
        %v952 = vadd.f32 %v916, %v917
        %v953 = vrot.slane %v952, 4
        %v954 = vadd.f32 %v952, %v953
        %v955 = vrot.slane %v954, 2
        %v956 = vadd.f32 %v954, %v955
        %v957 = vrot.slane %v956, 1
        %v958 = vadd.f32 %v956, %v957
        %v959 = vadd.f32 %v918, %v919
        %v960 = vrot.slane %v959, 4
        %v961 = vadd.f32 %v959, %v960
        %v962 = vrot.slane %v961, 2
        %v963 = vadd.f32 %v961, %v962
        %v964 = vrot.slane %v963, 1
        %v965 = vadd.f32 %v963, %v964
        %v966 = vadd.f32 %v920, %v921
        %v967 = vrot.slane %v966, 4
        %v968 = vadd.f32 %v966, %v967
        %v969 = vrot.slane %v968, 2
        %v970 = vadd.f32 %v968, %v969
        %v971 = vrot.slane %v970, 1
        %v972 = vadd.f32 %v970, %v971
        %v973 = vadd.f32 %v922, %v923
        %v974 = vrot.slane %v973, 4
        %v975 = vadd.f32 %v973, %v974
        %v976 = vrot.slane %v975, 2
        %v977 = vadd.f32 %v975, %v976
        %v978 = vrot.slane %v977, 1
        %v979 = vadd.f32 %v977, %v978
        %vm988 = vcmask 1041409
        %v989 = vsel %vm988, %v937, %v930
        %vm990 = vcmask 1042434
        %v991 = vsel %vm990, %v944, %v989
        %vm992 = vcmask 1043459
        %v993 = vsel %vm992, %v951, %v991
        %vm994 = vcmask 1044484
        %v995 = vsel %vm994, %v958, %v993
        %vm996 = vcmask 1045509
        %v997 = vsel %vm996, %v965, %v995
        %vm998 = vcmask 1046534
        %v999 = vsel %vm998, %v972, %v997
        %vm1000 = vcmask 1047559
        %v1001 = vsel %vm1000, %v979, %v999
        %v1003 = vadd.f32 %v512, %v1001
        %v1004 = vld [vmem:[#allocation2] sm:$0xff]
        %v1005 = vadd.f32 %v1004, %v1003
        %1006 = vst [vmem:[#allocation2] sm:$0xff] %v1005
        // Predicated region
        $region81: #{tpu_custom_call.1} parent=51 // pred_check
          %p1007 = pneg %p448
        $region82: #{tpu_custom_call.1} parent=51 // pred_check_branch
          %1009 = sbr.rel (%p1007) target = $region84
        $region83: #{tpu_custom_call.1} parent=51 // pred_region
          %v1010 = vld [vmem:[#allocation2] sm:$0xff]
          %v1011 = vpack.c.bf16 %v1010, %v1010
          %v1012 = vld [vmem:[#allocation12] sm:$0xf]
          %v1013 = vld [vmem:[#allocation12 + $0x4] sm:$0xf]
          %v1014 = vld [vmem:[#allocation12 + $0x8] sm:$0xf]
          %v1015 = vld [vmem:[#allocation12 + $0xc] sm:$0xf]
          %v1016 = vld [vmem:[#allocation12 + $0x10] sm:$0xf]
          %v1017 = vld [vmem:[#allocation12 + $0x14] sm:$0xf]
          %v1018 = vld [vmem:[#allocation12 + $0x18] sm:$0xf]
          %v1019 = vld [vmem:[#allocation12 + $0x1c] sm:$0xf]
          %v1020 = vld [vmem:[#allocation12 + $0x20] sm:$0xf]
          %v1021 = vld [vmem:[#allocation12 + $0x24] sm:$0xf]
          %v1022 = vld [vmem:[#allocation12 + $0x28] sm:$0xf]
          %v1023 = vld [vmem:[#allocation12 + $0x2c] sm:$0xf]
          %v1024 = vld [vmem:[#allocation12 + $0x30] sm:$0xf]
          %v1025 = vld [vmem:[#allocation12 + $0x34] sm:$0xf]
          %v1026 = vld [vmem:[#allocation12 + $0x38] sm:$0xf]
          %v1027 = vld [vmem:[#allocation12 + $0x3c] sm:$0xf]
          %v1028 = vld [vmem:[%s7] sm:$0x1]
          %v1030 = vlaneseq
          %v1031 = vshrl.u32 %v1030, 7
          %v1032 = vsub.s32 0, %v1031
          %v1033 = vrot.slane %v1028, %v1032
          %v1051 = vunpack.c.l.b16 %v1012
          %v1052 = vunpack.c.l.b16 %v1013
          %v1053 = vunpack.c.l.b16 %v1014
          %v1054 = vunpack.c.l.b16 %v1015
          %v1055 = vunpack.c.l.b16 %v1016
          %v1056 = vunpack.c.l.b16 %v1017
          %v1057 = vunpack.c.l.b16 %v1018
          %v1058 = vunpack.c.l.b16 %v1019
          %v1059 = vunpack.c.l.b16 %v1020
          %v1060 = vunpack.c.l.b16 %v1021
          %v1061 = vunpack.c.l.b16 %v1022
          %v1062 = vunpack.c.l.b16 %v1023
          %v1063 = vunpack.c.l.b16 %v1024
          %v1064 = vunpack.c.l.b16 %v1025
          %v1065 = vunpack.c.l.b16 %v1026
          %v1066 = vunpack.c.l.b16 %v1027
          %v1067 = vpack.c.b16 %v1052, %v1051
          %v1068 = vpack.c.b16 %v1054, %v1053
          %v1069 = vpack.c.b16 %v1056, %v1055
          %v1070 = vpack.c.b16 %v1058, %v1057
          %v1071 = vpack.c.b16 %v1060, %v1059
          %v1072 = vpack.c.b16 %v1062, %v1061
          %v1073 = vpack.c.b16 %v1064, %v1063
          %v1074 = vpack.c.b16 %v1066, %v1065
          %1083 = vmatprep.subr.bf16.mxu0 0
          %1084 = vmatpush1.bf16.msra.mxu0 %v1067
          %1085 = vmatprep.subr.bf16.mxu0 0
          %1086 = vmatpush1.bf16.msra.mxu0 %v1068
          %1087 = vmatprep.subr.bf16.mxu0 0
          %1088 = vmatpush1.bf16.msra.mxu0 %v1069
          %1089 = vmatprep.subr.bf16.mxu0 0
          %1090 = vmatpush1.bf16.msra.mxu0 %v1070
          %1091 = vmatprep.subr.bf16.mxu0 0
          %1092 = vmatpush1.bf16.msra.mxu0 %v1071
          %1093 = vmatprep.subr.bf16.mxu0 0
          %1094 = vmatpush1.bf16.msra.mxu0 %v1072
          %1095 = vmatprep.subr.bf16.mxu0 0
          %1096 = vmatpush1.bf16.msra.mxu0 %v1073
          %1097 = vmatprep.subr.bf16.mxu0 0
          %1098 = vmatpush1.bf16.msra.mxu0 %v1074
          %1099 = vmatprep.subr.bf16.mxu0 0
          %1100 = vmatpush1.bf16.msra.mxu0 0
          %1101 = vmatprep.subr.bf16.mxu0 0
          %1102 = vmatpush1.bf16.msra.mxu0 0
          %1103 = vmatprep.subr.bf16.mxu0 0
          %1104 = vmatpush1.bf16.msra.mxu0 0
          %1105 = vmatprep.subr.bf16.mxu0 0
          %1106 = vmatpush1.bf16.msra.mxu0 0
          %1107 = vmatprep.subr.bf16.mxu0 0
          %1108 = vmatpush1.bf16.msra.mxu0 0
          %1109 = vmatprep.subr.bf16.mxu0 0
          %1110 = vmatpush1.bf16.msra.mxu0 0
          %1111 = vmatprep.subr.bf16.mxu0 0
          %1112 = vmatpush1.bf16.msra.mxu0 0
          %1113 = vmatprep.subr.bf16.mxu0 0
          %1114 = vmatpush1.bf16.msra.mxu0 0
          %1115 = vmatprep.mubr.bf16.mxu0 0
          %1116 = vmatmul.mubr.bf16.gmra.mrb[0].mxu0 %v1011
          %v1117 = vpop.f32.mrb[0].mxu0
          %v1118 = vadd.f32 %v1033, %v1117
          %v1119 = vpop.f32.mrb[0].mxu0
          %v1120 = vpop.f32.mrb[0].mxu0
          %v1121 = vpop.f32.mrb[0].mxu0
          %1122 = vdwg.mxu0
          %vm1123 = vcmp.gt.f32.partialorder %v1118, 0.0
          %v1124 = vmul.f32 %v1118, 0.01
          %v1125 = vsel %vm1123, %v1118, %v1124
          %1126 = vst [vmem:[%s444] sm:$0xff] %v1125
        $region84: #{tpu_custom_call.1} parent=51 // pred_fallthru
          _
        %s1127 = sand.u32 %s238, 1
        %s1128 = scalar_lea.sflag [#allocation5], %s1127
        %s1129 = sand.u32 %s238, 1
        %s1130 = smul.addr %s1129, 8
        %s1131 = scalar_lea.vmem [#allocation14], %s1130
        // Predicated region
        $region85: #{tpu_custom_call.1} parent=51 // pred_check
          %p1132 = pneg %p248
        $region86: #{tpu_custom_call.1} parent=51 // pred_check_branch
          %1134 = sbr.rel (%p1132) target = $region88
        $region87: #{tpu_custom_call.1} parent=51 // pred_region
          %s1136 = ssub.s32 128, 128
          %1137 = vsyncadd %s1128, %s1136
          %s1138 = smul.addr %s32, 128
          %s1139 = scalar_lea.hbm %s8, %s1138
          %s1141 = sshll.u32 %s1131, 4
          %s1142 = int_to_ptr.vmem [resolvable:$true] %s1141
          %1144 = dma.vmem_to_hbm [thread:$0]  %s1142, 128, %s1139, %s1128
        $region88: #{tpu_custom_call.1} parent=51 // pred_fallthru
          _
      $region52: #{tpu_custom_call.1} parent=5 // pred_fallthru
        _
      %p1145 = scmp.le.s32.totalorder 2, %s23
      // Predicated region
      $region89: #{tpu_custom_call.1} parent=5 // pred_check
        %p1146 = pneg %p1145
      $region90: #{tpu_custom_call.1} parent=5 // pred_check_branch
        %1148 = sbr.rel (%p1146) target = $region92
      $region91: #{tpu_custom_call.1} parent=5 // pred_region
        %s1149 = ssub.s32 %s23, 2
        // Predicated region
        $region93: #{tpu_custom_call.1} parent=91 // pred_check
          %p1150 = pneg %p254
        $region94: #{tpu_custom_call.1} parent=91 // pred_check_branch
          %1152 = sbr.rel (%p1150) target = $region96
        $region95: #{tpu_custom_call.1} parent=91 // pred_region
          %s1153 = sand.u32 %s239, 1
          %s1154 = scalar_lea.sflag [#allocation5], %s1153
          %s1155 = sand.u32 %s239, 1
          %s1156 = smul.addr %s1155, 8
          %s1157 = scalar_lea.vmem [#allocation14], %s1156
          %1158 = dma.done %s1154, 128
        $region96: #{tpu_custom_call.1} parent=91 // pred_fallthru
          _
      $region92: #{tpu_custom_call.1} parent=5 // pred_fallthru
        _
    $region6: #{tpu_custom_call.1} parent=1 // loop_footer
      %s27 = sadd.s32 1, %s23
    $region7: #{tpu_custom_call.1} parent=1 // loop_footer_branch
      %22 = sbr.rel target = $region3
    $region8: #{tpu_custom_call.1} parent=1 // loop_exit
      _
    %1159 = vsyncpa [#allocation4], 1
    %s1160 = scalar_lea.sflag [#allocation4], 1
    %1161 = vsyncpa %s1160, 1
    %1162 = vsyncpa [#allocation7], 1
    %s1163 = scalar_lea.sflag [#allocation7], 1
    %1164 = vsyncpa %s1163, 1
    %1165 = vsyncpa [#allocation10], 1
    %1166 = vsyncpa [#allocation13], 1
    %1167 = vsyncpa [#allocation5], 1
    %s1168 = scalar_lea.sflag [#allocation5], 1
    %1169 = vsyncpa %s1168, 1

</llo_original>
